<compile_context>
chip_gen: v7x
topology: tpu7x:2x2x1
jax: 0.10.0
libtpu: 0.0.40
codegen_flags: <defaults>
</compile_context>

<pallas_src>
import jax
import jax.numpy as jnp
from jax.experimental import pallas as pl
from jax.experimental.pallas import tpu as pltpu

B1_CONST = 0.5      # b1 = torch.zeros(1,1,1,1).fill_(0.5) in the reference module
_LANE = 128
_MAX_BLOCK_ROWS = 4096   # (4096, 128) f32 = 2 MiB per block


def _fma_kernel(params_ref, x_ref, o_ref):
    # params_ref: SMEM (2,) f32 = [W, Bc].  One FMA per element on the VPU.
    o_ref[...] = params_ref[0] * x_ref[...] + params_ref[1]


def model_forward(x, w1, bias1, w2, bias2):
    """Forward of the torch9554 Model. x: (N, 1, H, W) -> same shape/dtype."""
    orig_shape = x.shape
    orig_dtype = x.dtype

    # --- scalar folding (not per-element work; pure win) -------------------
    w1s = w1.reshape(()).astype(jnp.float32)
    w2s = w2.reshape(()).astype(jnp.float32)
    b1s = bias1.reshape(()).astype(jnp.float32)
    b2s = bias2.reshape(()).astype(jnp.float32)
    W = 0.5 * (w1s + w2s)
    Bc = 0.5 * (b1s + b2s + B1_CONST - 0.05)
    params = jnp.stack([W, Bc])  # (2,) f32, lives in SMEM

    # --- lane-dense slab layout --------------------------------------------
    total = x.size
    rows = pl.cdiv(total, _LANE)
    # Small inputs: single full-array block (block == full dims, so the
    # (8,128) divisibility rule is satisfied).  Large inputs: 4096-row blocks.
    block_rows = rows if rows <= _MAX_BLOCK_ROWS else _MAX_BLOCK_ROWS
    rows_padded = pl.cdiv(rows, block_rows) * block_rows
    padded_total = rows_padded * _LANE

    flat = x.reshape(-1).astype(jnp.float32)
    if padded_total != total:
        flat = jnp.pad(flat, (0, padded_total - total))
    slab = flat.reshape(rows_padded, _LANE)

    n_blocks = rows_padded // block_rows

    out_slab = pl.pallas_call(
        _fma_kernel,
        out_shape=jax.ShapeDtypeStruct((rows_padded, _LANE), jnp.float32),
        grid=(n_blocks,),
        in_specs=[
            pl.BlockSpec(memory_space=pltpu.SMEM),                # [W, Bc]
            pl.BlockSpec((block_rows, _LANE), lambda i: (i, 0)),  # x tile
        ],
        out_specs=pl.BlockSpec((block_rows, _LANE), lambda i: (i, 0)),
        compiler_params=pltpu.CompilerParams(
            dimension_semantics=("parallel",)),  # megacore sharding on v7x
    )(params, slab)

    return out_slab.reshape(-1)[:total].reshape(orig_shape).astype(orig_dtype)


if __name__ == "__main__":
    key = jax.random.PRNGKey(0)
    kx, kw1, kb1, kw2, kb2 = jax.random.split(key, 5)

    # Input consistent with the module: single channel, small spatial dims.
    x = jax.random.normal(kx, (2, 1, 16, 16), dtype=jnp.float32)

    # Conv2d(1, 1, 1): weight (1,1,1,1), bias (1,).  PyTorch default init is
    # uniform(-bound, bound) with bound = 1/sqrt(fan_in) = 1.0 here.
    w1 = jax.random.uniform(kw1, (1, 1, 1, 1), jnp.float32, -1.0, 1.0)
    b1 = jax.random.uniform(kb1, (1,), jnp.float32, -1.0, 1.0)
    w2 = jax.random.uniform(kw2, (1, 1, 1, 1), jnp.float32, -1.0, 1.0)
    b2 = jax.random.uniform(kb2, (1,), jnp.float32, -1.0, 1.0)

    out = model_forward(x, w1, b1, w2, b2)
    out = jax.block_until_ready(out)

    # Reference (plain JAX) check of the original (unfolded) semantics.
    y1_ref = w1.reshape(()) * x + b1.reshape(())
    y2_ref = w2.reshape(()) * x + b2.reshape(())
    ref = 0.5 * (y1_ref + y2_ref + B1_CONST - 0.05)
    assert out.shape == x.shape and out.dtype == x.dtype
    # Folding W/Bc changes rounding at the ~1 ulp level; 1e-6 tolerance holds.
    assert jnp.allclose(out, ref, atol=1e-6, rtol=1e-6)

    print("KERNEL_OK")
</pallas_src>

<mosaic_0001>
module attributes {stable_mosaic.version = 11 : i64} {
  func.func @_fma_kernel(%arg0: i32, %arg1: memref<2xf32, #tpu.memory_space<smem>>, %arg2: memref<4x128xf32, #tpu.memory_space<vmem>>, %arg3: memref<4x128xf32, #tpu.memory_space<vmem>>) attributes {dimension_semantics = [#tpu.dimension_semantics<parallel>], iteration_bounds = array<i64: 1>, scalar_prefetch = 0 : i64, scratch_operands = 0 : i64, tpu.core_type = #tpu.core_type<tc>, window_params = [{transform_indices = @transform_0, window_bounds = array<i64: 2>}, {transform_indices = @transform_1, window_bounds = array<i64: 4, 128>}, {transform_indices = @transform_2, window_bounds = array<i64: 4, 128>}]} {
    %c0 = arith.constant 0 : index
    %0 = memref.load %arg1[%c0] : memref<2xf32, #tpu.memory_space<smem>>
    %c0_0 = arith.constant 0 : index
    %c0_1 = arith.constant 0 : index
    %1 = vector.load %arg2[%c0_0, %c0_1] : memref<4x128xf32, #tpu.memory_space<vmem>>, vector<4x128xf32>
    %2 = vector.broadcast %0 : f32 to vector<4x128xf32>
    %3 = arith.mulf %2, %1 : vector<4x128xf32>
    %c1 = arith.constant 1 : index
    %4 = memref.load %arg1[%c1] : memref<2xf32, #tpu.memory_space<smem>>
    %5 = vector.broadcast %4 : f32 to vector<4x128xf32>
    %6 = arith.addf %3, %5 : vector<4x128xf32>
    %c0_2 = arith.constant 0 : index
    %c0_3 = arith.constant 0 : index
    %7 = vector.load %arg3[%c0_2, %c0_3] : memref<4x128xf32, #tpu.memory_space<vmem>>, vector<4x128xf32>
    tpu.vector_store %arg3[%c0_2, %c0_3], %6 {strides = array<i32>} : memref<4x128xf32, #tpu.memory_space<vmem>>, vector<4x128xf32>,
    return
  }
  func.func @transform_0(%arg0: i32) -> i32 {
    %c0_i32 = arith.constant 0 : i32
    %c0_i32_0 = arith.constant 0 : i32
    return %c0_i32 : i32
  }
  func.func @transform_1(%arg0: i32) -> (i32, i32) {
    %c0_i32 = arith.constant 0 : i32
    %c0_i32_0 = arith.constant 0 : i32
    return %arg0, %c0_i32 : i32, i32
  }
  func.func @transform_2(%arg0: i32) -> (i32, i32) {
    %c0_i32 = arith.constant 0 : i32
    %c0_i32_0 = arith.constant 0 : i32
    return %arg0, %c0_i32 : i32, i32
  }
}

</mosaic_0001>

<llo_original>
// kernel: tpu_custom_call.1
$region0: #{tpu_custom_call.1}
  #allocation0 [shape = 'u32[]', space=smem, size = 0x4, offset = 0x4, fixed_abs, tag = 'smem constant byte address 0x4 - core index']
  #allocation1 [shape = 'u32[144,128]{1,0:T(1,128)}', space=vmem, size = 0x12000, scoped, tag = 'internal scratch']
  %s0 = inlined_call_operand.hbm [shape: f32[2], index: 0, kind: input, shape index: {}]
  %s1 = inlined_call_operand.hbm [shape: f32[4,128], index: 1, kind: input, shape index: {}]
  %s2 = inlined_call_operand.hbm [shape: f32[4,128], index: 2, kind: output, shape index: {}]
  %s3 = sld [smem:[#allocation0]]
  $region26: #{tpu_custom_call.1} parent=0
    _
  %s5 = ssub.s32 1, %s3
  %s6 = scalar_select 0, %s5, %s3
  $region1: #{tpu_custom_call.1} parent=0
    #allocation2 [shape = 'u8[512]{0}', space=smem, size = 0x200, scoped, tag = 'input window, operand 0, single buffered']
    #allocation3 [shape = 's32[1]{0}', space=sflag, size = 0x4, scoped, tag = 'scoped memory for tpu_custom_call.1']
    #allocation4 [shape = 's32[1]{0}', space=sflag, size = 0x4, scoped, tag = 'scoped memory for tpu_custom_call.1']
    #allocation5 [shape = 's32[1]{0}', space=sflag, size = 0x4, scoped, tag = 'scoped memory for tpu_custom_call.1']
    #allocation6 [shape = 'u8[2048]{0}', space=vmem, size = 0x800, scoped, tag = 'input window, operand 1, single buffered']
    #allocation7 [shape = 'u8[2048]{0}', space=vmem, size = 0x800, scoped, tag = 'output window, operand 0, single buffered']
    %7 = vsyncpa [#allocation5], 0
    %8 = vsyncpa [#allocation3], 0
    %9 = vsyncpa [#allocation4], 0
    // Predicated region
    $region2: #{tpu_custom_call.1} parent=1 // pred_check
      _
    $region3: #{tpu_custom_call.1} parent=1 // pred_check_branch
      %11 = sbr.rel (0) target = $region5
    $region4: #{tpu_custom_call.1} parent=1 // pred_region
      %s13 = ssub.s32 16, 16
      %14 = vsyncadd [#allocation5], %s13
      %17 = dma.hbm_to_smem %s0, 16, [#allocation2], [#allocation5]
    $region5: #{tpu_custom_call.1} parent=1 // pred_fallthru
      _
    // Predicated region
    $region6: #{tpu_custom_call.1} parent=1 // pred_check
      _
    $region7: #{tpu_custom_call.1} parent=1 // pred_check_branch
      %19 = sbr.rel (0) target = $region9
    $region8: #{tpu_custom_call.1} parent=1 // pred_region
      %s21 = ssub.s32 64, 64
      %22 = vsyncadd [#allocation3], %s21
      %s24 = sshll.u32 [#allocation6], 4
      %s25 = int_to_ptr.vmem [resolvable:$true] %s24
      %27 = dma.hbm_to_vmem [thread:$0]  %s1, 64, %s25, [#allocation3]
    $region9: #{tpu_custom_call.1} parent=1 // pred_fallthru
      _
    // Predicated region
    $region10: #{tpu_custom_call.1} parent=1 // pred_check
      _
    $region11: #{tpu_custom_call.1} parent=1 // pred_check_branch
      %29 = sbr.rel (0) target = $region13
    $region12: #{tpu_custom_call.1} parent=1 // pred_region
      %30 = dma.done [#allocation5], 16
    $region13: #{tpu_custom_call.1} parent=1 // pred_fallthru
      _
    // Predicated region
    $region14: #{tpu_custom_call.1} parent=1 // pred_check
      _
    $region15: #{tpu_custom_call.1} parent=1 // pred_check_branch
      %32 = sbr.rel (0) target = $region17
    $region16: #{tpu_custom_call.1} parent=1 // pred_region
      %33 = dma.done [#allocation3], 64
    $region17: #{tpu_custom_call.1} parent=1 // pred_fallthru
      _
    %34 = sfence
    %s35 = sld [smem:[#allocation2]]
    %v36 = vld [vmem:[#allocation6] sm:$0xf]
    %v37 = vstv %s35
    %v38 = vmul.f32 %v37, %v36
    %s39 = sld [smem:[#allocation2 + $0x1]]
    %v40 = vstv %s39
    %v41 = vadd.f32 %v38, %v40
    %42 = vst [vmem:[#allocation7] sm:$0xf] %v41
    // Predicated region
    $region18: #{tpu_custom_call.1} parent=1 // pred_check
      _
    $region19: #{tpu_custom_call.1} parent=1 // pred_check_branch
      %44 = sbr.rel (0) target = $region21
    $region20: #{tpu_custom_call.1} parent=1 // pred_region
      %s46 = ssub.s32 64, 64
      %47 = vsyncadd [#allocation4], %s46
      %s49 = sshll.u32 [#allocation7], 4
      %s50 = int_to_ptr.vmem [resolvable:$true] %s49
      %52 = dma.vmem_to_hbm [thread:$0]  %s50, 64, %s2, [#allocation4]
    $region21: #{tpu_custom_call.1} parent=1 // pred_fallthru
      _
    // Predicated region
    $region22: #{tpu_custom_call.1} parent=1 // pred_check
      _
    $region23: #{tpu_custom_call.1} parent=1 // pred_check_branch
      %54 = sbr.rel (0) target = $region25
    $region24: #{tpu_custom_call.1} parent=1 // pred_region
      %55 = dma.done [#allocation4], 64
    $region25: #{tpu_custom_call.1} parent=1 // pred_fallthru
      _
    %56 = vsyncpa [#allocation3], 1
    %57 = vsyncpa [#allocation4], 1
    %58 = vsyncpa [#allocation5], 1

</llo_original>
